<compile_context>
chip_gen: v7x
topology: tpu7x:2x2x1
jax: 0.10.0
libtpu: 0.0.40
codegen_flags: <defaults>
</compile_context>

<pallas_src>
import jax
import jax.numpy as jnp
import numpy as np
from jax.experimental import pallas as pl
from jax.experimental.pallas import tpu as pltpu


# --------------------------------------------------------------------------
# Kernel
# --------------------------------------------------------------------------
def _make_alpha_loss_kernel(inv_batch):
  """loss = (1/B) * sum_b [ (v_b - v*_b)^2 - sum_a p*_{b,a} * logp_{b,a} ]."""

  def kernel(logp_ref, v_ref, tp_ref, tv_ref, out_ref):
    step = pl.program_id(0)

    @pl.when(step == 0)
    def _init():
      out_ref[...] = jnp.zeros_like(out_ref)

    dv = v_ref[...] - tv_ref[...]                                        # [tb, 1]
    ce = jnp.sum(tp_ref[...] * logp_ref[...], axis=1, keepdims=True)     # [tb, 1]
    out_ref[...] += jnp.sum(dv * dv - ce, axis=0, keepdims=True)         # [1, 1]

    # Single final scale (not per tile) -> same reduction order as the reference.
    @pl.when(step == pl.num_programs(0) - 1)
    def _finalize():
      out_ref[...] = out_ref[...] * inv_batch

  return kernel


# --------------------------------------------------------------------------
# Wrapper
# --------------------------------------------------------------------------
def _pick_batch_tile(batch, cap=1024):
  """Whole batch in one step if small; else largest x8-aligned divisor <= cap."""
  if batch <= cap:
    return batch
  for tb in range(cap, 7, -1):
    if batch % tb == 0 and tb % 8 == 0:
      return tb
  return batch  # fall back to a single step


def alpha_loss(log_ps, vs, target_ps, target_vs, tb=None):
  """Pallas TPU implementation of AlphaLoss.forward -> scalar loss."""
  log_ps = jnp.asarray(log_ps, jnp.float32)
  target_ps = jnp.asarray(target_ps, jnp.float32)
  B, A = log_ps.shape
  vs = jnp.asarray(vs, jnp.float32).reshape(B, -1)
  target_vs = jnp.asarray(target_vs, jnp.float32).reshape(B, -1)
  assert target_ps.shape == (B, A)
  assert vs.shape == (B, 1) and target_vs.shape == (B, 1)

  if tb is None:
    tb = _pick_batch_tile(B)
  assert B % tb == 0 and (tb == B or tb % 8 == 0), (B, tb)
  num_tiles = B // tb

  out = pl.pallas_call(
      _make_alpha_loss_kernel(1.0 / B),
      out_shape=jax.ShapeDtypeStruct((1, 1), jnp.float32),
      grid=(num_tiles,),
      in_specs=[pl.BlockSpec((tb, A), lambda i: (i, 0)),
                pl.BlockSpec((tb, 1), lambda i: (i, 0)),
                pl.BlockSpec((tb, A), lambda i: (i, 0)),
                pl.BlockSpec((tb, 1), lambda i: (i, 0))],
      out_specs=pl.BlockSpec((1, 1), lambda i: (0, 0)),   # resident accumulator
      compiler_params=pltpu.CompilerParams(dimension_semantics=("arbitrary",)),
  )(log_ps, vs, target_ps, target_vs)
  return out[0, 0]


# --------------------------------------------------------------------------
# Pure-JAX reference (mirror of the PyTorch module)
# --------------------------------------------------------------------------
def alpha_loss_reference(log_ps, vs, target_ps, target_vs):
  value_loss = jnp.mean((vs - target_vs) ** 2)
  policy_loss = -jnp.mean(jnp.sum(target_ps * log_ps, axis=1))
  return value_loss + policy_loss


# --------------------------------------------------------------------------
if __name__ == "__main__":
  key = jax.random.PRNGKey(0)
  ks = jax.random.split(key, 8)

  # 7x7 board -> 49 policy entries; small batch for the demo.
  B, A = 32, 49
  logits = jax.random.normal(ks[0], (B, A), jnp.float32)
  log_ps = jax.nn.log_softmax(logits, axis=-1)           # network emits log_softmax
  vs = jnp.tanh(jax.random.normal(ks[1], (B, 1), jnp.float32))
  raw = jax.random.uniform(ks[2], (B, A), jnp.float32, minval=1e-3, maxval=1.0)
  target_ps = raw / jnp.sum(raw, axis=1, keepdims=True)
  target_vs = jax.random.uniform(ks[3], (B, 1), jnp.float32, minval=-1.0, maxval=1.0)

  loss = jax.block_until_ready(alpha_loss(log_ps, vs, target_ps, target_vs))
  loss_ref = alpha_loss_reference(log_ps, vs, target_ps, target_vs)
  np.testing.assert_allclose(np.asarray(loss), np.asarray(loss_ref),
                             rtol=1e-5, atol=1e-5)

  # Multi-tile path: partial sums accumulated across grid steps, scaled once at
  # the last step (exercises the pl.when init/finalize logic).
  B2 = 256
  logits2 = jax.random.normal(ks[4], (B2, A), jnp.float32)
  log_ps2 = jax.nn.log_softmax(logits2, axis=-1)
  vs2 = jnp.tanh(jax.random.normal(ks[5], (B2, 1), jnp.float32))
  raw2 = jax.random.uniform(ks[6], (B2, A), jnp.float32, minval=1e-3, maxval=1.0)
  target_ps2 = raw2 / jnp.sum(raw2, axis=1, keepdims=True)
  target_vs2 = jax.random.uniform(ks[7], (B2, 1), jnp.float32, minval=-1.0, maxval=1.0)

  loss2 = jax.block_until_ready(
      alpha_loss(log_ps2, vs2, target_ps2, target_vs2, tb=64))
  loss2_ref = alpha_loss_reference(log_ps2, vs2, target_ps2, target_vs2)
  np.testing.assert_allclose(np.asarray(loss2), np.asarray(loss2_ref),
                             rtol=1e-5, atol=1e-5)

  print("KERNEL_OK")
</pallas_src>

<mosaic_0001>
module attributes {stable_mosaic.version = 11 : i64} {
  func.func @kernel(%arg0: i32, %arg1: memref<32x49xf32, #tpu.memory_space<vmem>>, %arg2: memref<32x1xf32, #tpu.memory_space<vmem>>, %arg3: memref<32x49xf32, #tpu.memory_space<vmem>>, %arg4: memref<32x1xf32, #tpu.memory_space<vmem>>, %arg5: memref<1x1xf32, #tpu.memory_space<vmem>>) attributes {dimension_semantics = [#tpu.dimension_semantics<arbitrary>], iteration_bounds = array<i64: 1>, scalar_prefetch = 0 : i64, scratch_operands = 0 : i64, tpu.core_type = #tpu.core_type<tc>, window_params = [{transform_indices = @transform_0, window_bounds = array<i64: 32, 49>}, {transform_indices = @transform_1, window_bounds = array<i64: 32, 1>}, {transform_indices = @transform_2, window_bounds = array<i64: 32, 49>}, {transform_indices = @transform_3, window_bounds = array<i64: 32, 1>}, {pipeline_mode = #tpu.pipeline_mode<synchronous>, transform_indices = @transform_4, window_bounds = array<i64: 1, 1>}]} {
    %c0_i32 = arith.constant 0 : i32
    %0 = arith.cmpi eq, %arg0, %c0_i32 : i32
    %1 = arith.extui %0 : i1 to i32
    %c0_i32_0 = arith.constant 0 : i32
    %2 = arith.cmpi ne, %1, %c0_i32_0 : i32
    scf.if %2 {
      %cst_15 = arith.constant 0.000000e+00 : f32
      %21 = vector.broadcast %cst_15 : f32 to vector<1x1xf32>
      %c0_16 = arith.constant 0 : index
      %c0_17 = arith.constant 0 : index
      %22 = vector.load %arg5[%c0_16, %c0_17] : memref<1x1xf32, #tpu.memory_space<vmem>>, vector<1x1xf32>
      tpu.vector_store %arg5[%c0_16, %c0_17], %21 {strides = array<i32>} : memref<1x1xf32, #tpu.memory_space<vmem>>, vector<1x1xf32>,
    } else {
    }
    %c0 = arith.constant 0 : index
    %c0_1 = arith.constant 0 : index
    %3 = vector.load %arg2[%c0, %c0_1] : memref<32x1xf32, #tpu.memory_space<vmem>>, vector<32x1xf32>
    %c0_2 = arith.constant 0 : index
    %c0_3 = arith.constant 0 : index
    %4 = vector.load %arg4[%c0_2, %c0_3] : memref<32x1xf32, #tpu.memory_space<vmem>>, vector<32x1xf32>
    %5 = arith.subf %3, %4 : vector<32x1xf32>
    %c0_4 = arith.constant 0 : index
    %c0_5 = arith.constant 0 : index
    %6 = vector.load %arg3[%c0_4, %c0_5] : memref<32x49xf32, #tpu.memory_space<vmem>>, vector<32x49xf32>
    %c0_6 = arith.constant 0 : index
    %c0_7 = arith.constant 0 : index
    %7 = vector.load %arg1[%c0_6, %c0_7] : memref<32x49xf32, #tpu.memory_space<vmem>>, vector<32x49xf32>
    %8 = arith.mulf %6, %7 : vector<32x49xf32>
    %cst = arith.constant dense<0.000000e+00> : vector<32xf32>
    %9 = vector.multi_reduction <add>, %8, %cst [1] : vector<32x49xf32> to vector<32xf32>
    %10 = vector.shape_cast %9 : vector<32xf32> to vector<32x1xf32>
    %c0_8 = arith.constant 0 : index
    %c0_9 = arith.constant 0 : index
    %11 = vector.load %arg5[%c0_8, %c0_9] : memref<1x1xf32, #tpu.memory_space<vmem>>, vector<1x1xf32>
    %12 = arith.mulf %5, %5 : vector<32x1xf32>
    %13 = arith.subf %12, %10 : vector<32x1xf32>
    %cst_10 = arith.constant dense<0.000000e+00> : vector<1xf32>
    %14 = vector.multi_reduction <add>, %13, %cst_10 [0] : vector<32x1xf32> to vector<1xf32>
    %15 = vector.shape_cast %14 : vector<1xf32> to vector<1x1xf32>
    %16 = arith.addf %11, %15 : vector<1x1xf32>
    %c0_11 = arith.constant 0 : index
    %c0_12 = arith.constant 0 : index
    %17 = vector.load %arg5[%c0_11, %c0_12] : memref<1x1xf32, #tpu.memory_space<vmem>>, vector<1x1xf32>
    tpu.vector_store %arg5[%c0_11, %c0_12], %16 {strides = array<i32>} : memref<1x1xf32, #tpu.memory_space<vmem>>, vector<1x1xf32>,
    %c0_i32_13 = arith.constant 0 : i32
    %18 = arith.cmpi eq, %arg0, %c0_i32_13 : i32
    %19 = arith.extui %18 : i1 to i32
    %c0_i32_14 = arith.constant 0 : i32
    %20 = arith.cmpi ne, %19, %c0_i32_14 : i32
    scf.if %20 {
      %c0_15 = arith.constant 0 : index
      %c0_16 = arith.constant 0 : index
      %21 = vector.load %arg5[%c0_15, %c0_16] : memref<1x1xf32, #tpu.memory_space<vmem>>, vector<1x1xf32>
      %cst_17 = arith.constant 3.125000e-02 : f32
      %22 = vector.broadcast %cst_17 : f32 to vector<1x1xf32>
      %23 = arith.mulf %21, %22 : vector<1x1xf32>
      %c0_18 = arith.constant 0 : index
      %c0_19 = arith.constant 0 : index
      %24 = vector.load %arg5[%c0_18, %c0_19] : memref<1x1xf32, #tpu.memory_space<vmem>>, vector<1x1xf32>
      tpu.vector_store %arg5[%c0_18, %c0_19], %23 {strides = array<i32>} : memref<1x1xf32, #tpu.memory_space<vmem>>, vector<1x1xf32>,
    } else {
    }
    return
  }
  func.func @transform_0(%arg0: i32) -> (i32, i32) {
    %c0_i32 = arith.constant 0 : i32
    %c0_i32_0 = arith.constant 0 : i32
    return %arg0, %c0_i32 : i32, i32
  }
  func.func @transform_1(%arg0: i32) -> (i32, i32) {
    %c0_i32 = arith.constant 0 : i32
    %c0_i32_0 = arith.constant 0 : i32
    return %arg0, %c0_i32 : i32, i32
  }
  func.func @transform_2(%arg0: i32) -> (i32, i32) {
    %c0_i32 = arith.constant 0 : i32
    %c0_i32_0 = arith.constant 0 : i32
    return %arg0, %c0_i32 : i32, i32
  }
  func.func @transform_3(%arg0: i32) -> (i32, i32) {
    %c0_i32 = arith.constant 0 : i32
    %c0_i32_0 = arith.constant 0 : i32
    return %arg0, %c0_i32 : i32, i32
  }
  func.func @transform_4(%arg0: i32) -> (i32, i32) {
    %c0_i32 = arith.constant 0 : i32
    %c0_i32_0 = arith.constant 0 : i32
    %c0_i32_1 = arith.constant 0 : i32
    return %c0_i32, %c0_i32_0 : i32, i32
  }
}

</mosaic_0001>

<llo_original>
// kernel: tpu_custom_call.1
$region0: #{tpu_custom_call.1}
  #allocation0 [shape = 'u32[]', space=smem, size = 0x4, offset = 0x4, fixed_abs, tag = 'smem constant byte address 0x4 - core index']
  #allocation1 [shape = 'u32[144,128]{1,0:T(1,128)}', space=vmem, size = 0x12000, scoped, tag = 'internal scratch']
  %s0 = inlined_call_operand.vmem [shape: f32[32,49], index: 0, kind: input, shape index: {}]
  %s1 = inlined_call_operand.vmem [shape: f32[32,1], index: 1, kind: input, shape index: {}]
  %s2 = inlined_call_operand.vmem [shape: f32[32,49], index: 2, kind: input, shape index: {}]
  %s3 = inlined_call_operand.vmem [shape: f32[32,1], index: 3, kind: input, shape index: {}]
  %s4 = inlined_call_operand.hbm [shape: f32[1,1], index: 4, kind: output, shape index: {}]
  %s5 = sld [smem:[#allocation0]]
  $region34: #{tpu_custom_call.1} parent=0
    _
  %s7 = ssub.s32 1, %s5
  %s8 = scalar_select 0, %s7, %s5
  $region1: #{tpu_custom_call.1} parent=0
    #allocation2 [shape = 'u8[512]{0}', space=vmem, size = 0x400, scoped, tag = 'output window, operand 0, single buffered']
    #allocation3 [shape = 's32[1]{0}', space=sflag, size = 0x4, scoped, tag = 'scoped memory for tpu_custom_call.1']
    %9 = vsyncpa [#allocation3], 0
    // Predicated region
    $region2: #{tpu_custom_call.1} parent=1 // pred_check
      _
    $region3: #{tpu_custom_call.1} parent=1 // pred_check_branch
      %11 = sbr.rel (0) target = $region5
    $region4: #{tpu_custom_call.1} parent=1 // pred_region
      _
    $region5: #{tpu_custom_call.1} parent=1 // pred_fallthru
      _
    // Predicated region
    $region6: #{tpu_custom_call.1} parent=1 // pred_check
      _
    $region7: #{tpu_custom_call.1} parent=1 // pred_check_branch
      %13 = sbr.rel (0) target = $region9
    $region8: #{tpu_custom_call.1} parent=1 // pred_region
      _
    $region9: #{tpu_custom_call.1} parent=1 // pred_fallthru
      _
    // Predicated region
    $region10: #{tpu_custom_call.1} parent=1 // pred_check
      _
    $region11: #{tpu_custom_call.1} parent=1 // pred_check_branch
      %15 = sbr.rel (0) target = $region13
    $region12: #{tpu_custom_call.1} parent=1 // pred_region
      _
    $region13: #{tpu_custom_call.1} parent=1 // pred_fallthru
      _
    // Predicated region
    $region14: #{tpu_custom_call.1} parent=1 // pred_check
      _
    $region15: #{tpu_custom_call.1} parent=1 // pred_check_branch
      %17 = sbr.rel (0) target = $region17
    $region16: #{tpu_custom_call.1} parent=1 // pred_region
      _
    $region17: #{tpu_custom_call.1} parent=1 // pred_fallthru
      _
    %p18 = scmp.eq.s32.totalorder 0, 0
    // Predicated region
    $region18: #{tpu_custom_call.1} parent=1 // pred_check
      %p19 = pneg %p18
    $region19: #{tpu_custom_call.1} parent=1 // pred_check_branch
      %21 = sbr.rel (%p19) target = $region21
    $region20: #{tpu_custom_call.1} parent=1 // pred_region
      %vm22 = vcmask 0
      %23 = vst.msk [vmem:[#allocation2] sm:$0x1] %vm22, 0.0
    $region21: #{tpu_custom_call.1} parent=1 // pred_fallthru
      _
    %v24 = vld [vmem:[%s1] sm:$0xff]
    %v25 = vld [vmem:[%s1 + $0x8] sm:$0xff]
    %v26 = vld [vmem:[%s1 + $0x10] sm:$0xff]
    %v27 = vld [vmem:[%s1 + $0x18] sm:$0xff]
    %v28 = vld [vmem:[%s3] sm:$0xff]
    %v29 = vld [vmem:[%s3 + $0x8] sm:$0xff]
    %v30 = vld [vmem:[%s3 + $0x10] sm:$0xff]
    %v31 = vld [vmem:[%s3 + $0x18] sm:$0xff]
    %v32 = vsub.f32 %v24, %v28
    %v33 = vsub.f32 %v25, %v29
    %v34 = vsub.f32 %v26, %v30
    %v35 = vsub.f32 %v27, %v31
    %v36 = vld [vmem:[%s2] sm:$0xff]
    %v37 = vld [vmem:[%s2 + $0x8] sm:$0xff]
    %v38 = vld [vmem:[%s2 + $0x10] sm:$0xff]
    %v39 = vld [vmem:[%s2 + $0x18] sm:$0xff]
    %v40 = vld [vmem:[%s0] sm:$0xff]
    %v41 = vld [vmem:[%s0 + $0x8] sm:$0xff]
    %v42 = vld [vmem:[%s0 + $0x10] sm:$0xff]
    %v43 = vld [vmem:[%s0 + $0x18] sm:$0xff]
    %v44 = vmul.f32 %v36, %v40
    %v45 = vmul.f32 %v37, %v41
    %v46 = vmul.f32 %v38, %v42
    %v47 = vmul.f32 %v39, %v43
    %vm48 = vcmask 400384
    %v49 = vsel %vm48, %v44, 0.0
    %50 = vadd.xlane.f32.xlu0 %v49
    %v51 = vpop.xlane.xlu0 %50
    %v52 = vsel %vm48, %v45, 0.0
    %53 = vadd.xlane.f32.xlu0 %v52
    %v54 = vpop.xlane.xlu0 %53
    %v55 = vsel %vm48, %v46, 0.0
    %56 = vadd.xlane.f32.xlu0 %v55
    %v57 = vpop.xlane.xlu0 %56
    %v58 = vsel %vm48, %v47, 0.0
    %59 = vadd.xlane.f32.xlu0 %v58
    %v60 = vpop.xlane.xlu0 %59
    %v61 = vld [vmem:[#allocation2] sm:$0x1]
    %v62 = vmul.f32 %v32, %v32
    %v63 = vmul.f32 %v33, %v33
    %v64 = vmul.f32 %v34, %v34
    %v65 = vmul.f32 %v35, %v35
    %v66 = vsub.f32 %v62, %v51
    %v67 = vsub.f32 %v63, %v54
    %v68 = vsub.f32 %v64, %v57
    %v69 = vsub.f32 %v65, %v60
    %vm70 = vcmask 7168
    %v71 = vsel %vm70, %v66, 0.0
    %v72 = vsel %vm70, %v67, 0.0
    %v73 = vadd.f32 %v71, %v72
    %v74 = vsel %vm70, %v68, 0.0
    %v75 = vadd.f32 %v73, %v74
    %v76 = vsel %vm70, %v69, 0.0
    %v77 = vadd.f32 %v75, %v76
    %v78 = vrot.slane %v77, 4
    %v79 = vadd.f32 %v77, %v78
    %v80 = vrot.slane %v79, 2
    %v81 = vadd.f32 %v79, %v80
    %v82 = vrot.slane %v81, 1
    %v83 = vadd.f32 %v81, %v82
    %v84 = vadd.f32 %v61, %v83
    %vm85 = vcmask 0
    %86 = vst.msk [vmem:[#allocation2] sm:$0x1] %vm85, %v84
    // Predicated region
    $region22: #{tpu_custom_call.1} parent=1 // pred_check
      %p87 = pneg %p18
    $region23: #{tpu_custom_call.1} parent=1 // pred_check_branch
      %89 = sbr.rel (%p87) target = $region25
    $region24: #{tpu_custom_call.1} parent=1 // pred_region
      %v90 = vld [vmem:[#allocation2] sm:$0x1]
      %v91 = vmul.f32 %v90, 0.03125
      %92 = vst.msk [vmem:[#allocation2] sm:$0x1] %vm85, %v91
    $region25: #{tpu_custom_call.1} parent=1 // pred_fallthru
      _
    // Predicated region
    $region26: #{tpu_custom_call.1} parent=1 // pred_check
      _
    $region27: #{tpu_custom_call.1} parent=1 // pred_check_branch
      %94 = sbr.rel (0) target = $region29
    $region28: #{tpu_custom_call.1} parent=1 // pred_region
      %s96 = ssub.s32 16, 16
      %97 = vsyncadd [#allocation3], %s96
      %s99 = sshll.u32 [#allocation2], 4
      %s100 = int_to_ptr.vmem [resolvable:$true] %s99
      %102 = dma.vmem_to_hbm [thread:$0]  %s100, 16, %s4, [#allocation3]
    $region29: #{tpu_custom_call.1} parent=1 // pred_fallthru
      _
    // Predicated region
    $region30: #{tpu_custom_call.1} parent=1 // pred_check
      _
    $region31: #{tpu_custom_call.1} parent=1 // pred_check_branch
      %104 = sbr.rel (0) target = $region33
    $region32: #{tpu_custom_call.1} parent=1 // pred_region
      %105 = dma.done [#allocation3], 16
    $region33: #{tpu_custom_call.1} parent=1 // pred_fallthru
      _
    %106 = vsyncpa [#allocation3], 1

</llo_original>
